<compile_context>
chip_gen: v7x
topology: tpu7x:2x2x1
jax: 0.10.0
libtpu: 0.0.40
codegen_flags: <defaults>
</compile_context>

<pallas_src>
import jax
import jax.numpy as jnp
from jax.experimental import pallas as pl
from jax.experimental.pallas import tpu as pltpu


def _round_up(x, m):
    return ((x + m - 1) // m) * m


def phi_kernel(s_ref, a_ref, w1s_ref, w1a_ref, b1_ref, w2_ref, b2_ref,
               w3_ref, b3_ref, o_ref):
    # s: (TB, S) bf16, a: (TB, A) bf16
    # w1s: (S, H), w1a: (A, H), w2: (H, H), w3: (H, F)   -- bf16, VMEM-resident
    # b*: (1, *) f32 broadcast onto the f32 accumulators
    z = (jnp.dot(s_ref[...], w1s_ref[...], preferred_element_type=jnp.float32)
         + jnp.dot(a_ref[...], w1a_ref[...], preferred_element_type=jnp.float32)
         + b1_ref[...])
    z = jnp.maximum(z, 0.0).astype(jnp.bfloat16)

    z = jnp.dot(z, w2_ref[...], preferred_element_type=jnp.float32) + b2_ref[...]
    z = jnp.maximum(z, 0.0).astype(jnp.bfloat16)

    out = jnp.dot(z, w3_ref[...], preferred_element_type=jnp.float32) + b3_ref[...]
    o_ref[...] = out.astype(o_ref.dtype)


def phi_forward(state, action, params, *, tb=256):
    """state: (B, S), action: (B, A). Returns z_phi: (B, feature_dim) in f32."""
    w1s, w1a, b1, w2, b2, w3, b3 = params
    B, S = state.shape
    A = action.shape[1]
    H = w2.shape[0]
    F_dim = w3.shape[1]

    # bf16 activations / weights; f32 biases (added to the f32 accumulators).
    sb = state.astype(jnp.bfloat16)
    ab = action.astype(jnp.bfloat16)
    w1s_b = w1s.astype(jnp.bfloat16)
    w1a_b = w1a.astype(jnp.bfloat16)
    w2_b = w2.astype(jnp.bfloat16)
    w3_b = w3.astype(jnp.bfloat16)
    b1f = b1.astype(jnp.float32)
    b2f = b2.astype(jnp.float32)
    b3f = b3.astype(jnp.float32)

    # Batch tile: multiple of 8 sublanes, at most `tb`; pad B so tiles divide.
    # (At production H=F=1024: resident weights ~4.3 MiB + double-buffered
    #  input/output tiles at TB=256 ~2.5 MiB -> comfortably within VMEM.)
    tb_eff = min(_round_up(tb, 8), _round_up(B, 8))
    b_pad = _round_up(B, tb_eff)
    if b_pad != B:
        pad = b_pad - B
        sb = jnp.pad(sb, ((0, pad), (0, 0)))
        ab = jnp.pad(ab, ((0, pad), (0, 0)))
    grid = (b_pad // tb_eff,)

    def resident(shape):
        # Same block index for every grid step -> array stays resident in VMEM.
        return pl.BlockSpec(shape, lambda i: (0,) * len(shape))

    flops = 2 * b_pad * ((S + A) * H + H * H + H * F_dim)
    bytes_accessed = (
        2 * b_pad * (S + A)                       # bf16 inputs
        + 4 * b_pad * F_dim                        # f32 output
        + 2 * ((S + A) * H + H * H + H * F_dim)    # bf16 weights
        + 4 * (2 * H + F_dim))                     # f32 biases

    out = pl.pallas_call(
        phi_kernel,
        out_shape=jax.ShapeDtypeStruct((b_pad, F_dim), jnp.float32),
        grid=grid,
        in_specs=[
            pl.BlockSpec((tb_eff, S), lambda i: (i, 0)),   # state tile (pipelined)
            pl.BlockSpec((tb_eff, A), lambda i: (i, 0)),   # action tile (pipelined)
            resident(w1s_b.shape), resident(w1a_b.shape), resident(b1f.shape),
            resident(w2_b.shape), resident(b2f.shape),
            resident(w3_b.shape), resident(b3f.shape),
        ],
        out_specs=pl.BlockSpec((tb_eff, F_dim), lambda i: (i, 0)),
        compiler_params=pltpu.CompilerParams(
            dimension_semantics=("parallel",),   # megacore split of batch tiles
        ),
        cost_estimate=pl.CostEstimate(
            flops=flops, transcendentals=0, bytes_accessed=bytes_accessed),
    )(sb, ab, w1s_b, w1a_b, b1f, w2_b, b2f, w3_b, b3f)

    return out[:B]


def init_phi_params(key, state_dim, action_dim, feature_dim, hidden_dim):
    """Deterministic synthetic init (uniform, PyTorch nn.Linear default scale).

    W1 is split into (state_dim, H) and (action_dim, H) halves so the kernel
    never materializes concat(state, action).
    """
    def linear(k, fan_in, fan_out):
        kw, kb = jax.random.split(k)
        bound = 1.0 / jnp.sqrt(fan_in)
        w = jax.random.uniform(kw, (fan_in, fan_out), jnp.float32, -bound, bound)
        b = jax.random.uniform(kb, (1, fan_out), jnp.float32, -bound, bound)
        return w, b

    k1, k2, k3 = jax.random.split(key, 3)
    w1, b1 = linear(k1, state_dim + action_dim, hidden_dim)
    w1s, w1a = w1[:state_dim], w1[state_dim:]
    w2, b2 = linear(k2, hidden_dim, hidden_dim)
    w3, b3 = linear(k3, hidden_dim, feature_dim)
    return (w1s, w1a, b1, w2, b2, w3, b3)


if __name__ == "__main__":
    # Small shapes consistent with the module (reduced from 1024 for a quick test).
    # B=48 with tb=32 exercises both the multi-tile grid and the padding path.
    B, STATE_DIM, ACTION_DIM = 48, 16, 16
    HIDDEN_DIM, FEATURE_DIM = 128, 128

    key = jax.random.PRNGKey(0)
    k_params, k_state, k_action = jax.random.split(key, 3)

    params = init_phi_params(k_params, STATE_DIM, ACTION_DIM, FEATURE_DIM, HIDDEN_DIM)
    state = jax.random.normal(k_state, (B, STATE_DIM), jnp.float32)
    action = jax.random.normal(k_action, (B, ACTION_DIM), jnp.float32)

    z_phi = phi_forward(state, action, params, tb=32)
    jax.block_until_ready(z_phi)

    # Reference in plain JAX using the same bf16-compute / f32-accumulate recipe.
    w1s, w1a, b1, w2, b2, w3, b3 = params
    sb = state.astype(jnp.bfloat16)
    ab = action.astype(jnp.bfloat16)
    z = (jnp.dot(sb, w1s.astype(jnp.bfloat16), preferred_element_type=jnp.float32)
         + jnp.dot(ab, w1a.astype(jnp.bfloat16), preferred_element_type=jnp.float32)
         + b1)
    z = jnp.maximum(z, 0.0).astype(jnp.bfloat16)
    z = jnp.dot(z, w2.astype(jnp.bfloat16), preferred_element_type=jnp.float32) + b2
    z = jnp.maximum(z, 0.0).astype(jnp.bfloat16)
    ref = jnp.dot(z, w3.astype(jnp.bfloat16), preferred_element_type=jnp.float32) + b3

    assert z_phi.shape == (B, FEATURE_DIM)
    assert jnp.allclose(z_phi, ref, atol=2e-2, rtol=2e-2), float(
        jnp.max(jnp.abs(z_phi - ref)))

    print("KERNEL_OK")
</pallas_src>

<mosaic_0001>
module attributes {stable_mosaic.version = 11 : i64} {
  func.func @phi_kernel(%arg0: i32, %arg1: memref<32x16xbf16, #tpu.memory_space<vmem>>, %arg2: memref<32x16xbf16, #tpu.memory_space<vmem>>, %arg3: memref<16x128xbf16, #tpu.memory_space<vmem>>, %arg4: memref<16x128xbf16, #tpu.memory_space<vmem>>, %arg5: memref<1x128xf32, #tpu.memory_space<vmem>>, %arg6: memref<128x128xbf16, #tpu.memory_space<vmem>>, %arg7: memref<1x128xf32, #tpu.memory_space<vmem>>, %arg8: memref<128x128xbf16, #tpu.memory_space<vmem>>, %arg9: memref<1x128xf32, #tpu.memory_space<vmem>>, %arg10: memref<32x128xf32, #tpu.memory_space<vmem>>) attributes {dimension_semantics = [#tpu.dimension_semantics<parallel>], iteration_bounds = array<i64: 2>, scalar_prefetch = 0 : i64, scratch_operands = 0 : i64, tpu.core_type = #tpu.core_type<tc>, window_params = [{transform_indices = @transform_0, window_bounds = array<i64: 32, 16>}, {transform_indices = @transform_1, window_bounds = array<i64: 32, 16>}, {pipeline_mode = #tpu.pipeline_mode<synchronous>, transform_indices = @transform_2, window_bounds = array<i64: 16, 128>}, {pipeline_mode = #tpu.pipeline_mode<synchronous>, transform_indices = @transform_3, window_bounds = array<i64: 16, 128>}, {pipeline_mode = #tpu.pipeline_mode<synchronous>, transform_indices = @transform_4, window_bounds = array<i64: 1, 128>}, {pipeline_mode = #tpu.pipeline_mode<synchronous>, transform_indices = @transform_5, window_bounds = array<i64: 128, 128>}, {pipeline_mode = #tpu.pipeline_mode<synchronous>, transform_indices = @transform_6, window_bounds = array<i64: 1, 128>}, {pipeline_mode = #tpu.pipeline_mode<synchronous>, transform_indices = @transform_7, window_bounds = array<i64: 128, 128>}, {pipeline_mode = #tpu.pipeline_mode<synchronous>, transform_indices = @transform_8, window_bounds = array<i64: 1, 128>}, {transform_indices = @transform_9, window_bounds = array<i64: 32, 128>}]} {
    %c0 = arith.constant 0 : index
    %c0_0 = arith.constant 0 : index
    %0 = vector.load %arg1[%c0, %c0_0] : memref<32x16xbf16, #tpu.memory_space<vmem>>, vector<32x16xbf16>
    %c0_1 = arith.constant 0 : index
    %c0_2 = arith.constant 0 : index
    %1 = vector.load %arg3[%c0_1, %c0_2] : memref<16x128xbf16, #tpu.memory_space<vmem>>, vector<16x128xbf16>
    %cst = arith.constant dense<0.000000e+00> : vector<32x128xf32>
    %2 = tpu.matmul %0, %1, %cst {dimension_numbers = #tpu.dot_dimension_numbers<[1], [0], [0], [1], [0, 0, 1, 1], [], []>} : vector<32x16xbf16>, vector<16x128xbf16>, vector<32x128xf32> -> vector<32x128xf32>
    %c0_3 = arith.constant 0 : index
    %c0_4 = arith.constant 0 : index
    %3 = vector.load %arg2[%c0_3, %c0_4] : memref<32x16xbf16, #tpu.memory_space<vmem>>, vector<32x16xbf16>
    %c0_5 = arith.constant 0 : index
    %c0_6 = arith.constant 0 : index
    %4 = vector.load %arg4[%c0_5, %c0_6] : memref<16x128xbf16, #tpu.memory_space<vmem>>, vector<16x128xbf16>
    %cst_7 = arith.constant dense<0.000000e+00> : vector<32x128xf32>
    %5 = tpu.matmul %3, %4, %cst_7 {dimension_numbers = #tpu.dot_dimension_numbers<[1], [0], [0], [1], [0, 0, 1, 1], [], []>} : vector<32x16xbf16>, vector<16x128xbf16>, vector<32x128xf32> -> vector<32x128xf32>
    %6 = arith.addf %2, %5 : vector<32x128xf32>
    %c0_8 = arith.constant 0 : index
    %c0_9 = arith.constant 0 : index
    %7 = vector.load %arg5[%c0_8, %c0_9] : memref<1x128xf32, #tpu.memory_space<vmem>>, vector<1x128xf32>
    %8 = vector.broadcast %7 : vector<1x128xf32> to vector<32x128xf32>
    %9 = arith.addf %6, %8 : vector<32x128xf32>
    %cst_10 = arith.constant 0.000000e+00 : f32
    %10 = vector.broadcast %cst_10 : f32 to vector<32x128xf32>
    %11 = arith.maximumf %9, %10 : vector<32x128xf32>
    %12 = arith.truncf %11 : vector<32x128xf32> to vector<32x128xbf16>
    %c0_11 = arith.constant 0 : index
    %c0_12 = arith.constant 0 : index
    %13 = vector.load %arg6[%c0_11, %c0_12] : memref<128x128xbf16, #tpu.memory_space<vmem>>, vector<128x128xbf16>
    %cst_13 = arith.constant dense<0.000000e+00> : vector<32x128xf32>
    %14 = tpu.matmul %12, %13, %cst_13 {dimension_numbers = #tpu.dot_dimension_numbers<[1], [0], [0], [1], [0, 0, 1, 1], [], []>} : vector<32x128xbf16>, vector<128x128xbf16>, vector<32x128xf32> -> vector<32x128xf32>
    %c0_14 = arith.constant 0 : index
    %c0_15 = arith.constant 0 : index
    %15 = vector.load %arg7[%c0_14, %c0_15] : memref<1x128xf32, #tpu.memory_space<vmem>>, vector<1x128xf32>
    %16 = vector.broadcast %15 : vector<1x128xf32> to vector<32x128xf32>
    %17 = arith.addf %14, %16 : vector<32x128xf32>
    %cst_16 = arith.constant 0.000000e+00 : f32
    %18 = vector.broadcast %cst_16 : f32 to vector<32x128xf32>
    %19 = arith.maximumf %17, %18 : vector<32x128xf32>
    %20 = arith.truncf %19 : vector<32x128xf32> to vector<32x128xbf16>
    %c0_17 = arith.constant 0 : index
    %c0_18 = arith.constant 0 : index
    %21 = vector.load %arg8[%c0_17, %c0_18] : memref<128x128xbf16, #tpu.memory_space<vmem>>, vector<128x128xbf16>
    %cst_19 = arith.constant dense<0.000000e+00> : vector<32x128xf32>
    %22 = tpu.matmul %20, %21, %cst_19 {dimension_numbers = #tpu.dot_dimension_numbers<[1], [0], [0], [1], [0, 0, 1, 1], [], []>} : vector<32x128xbf16>, vector<128x128xbf16>, vector<32x128xf32> -> vector<32x128xf32>
    %c0_20 = arith.constant 0 : index
    %c0_21 = arith.constant 0 : index
    %23 = vector.load %arg9[%c0_20, %c0_21] : memref<1x128xf32, #tpu.memory_space<vmem>>, vector<1x128xf32>
    %24 = vector.broadcast %23 : vector<1x128xf32> to vector<32x128xf32>
    %25 = arith.addf %22, %24 : vector<32x128xf32>
    %c0_22 = arith.constant 0 : index
    %c0_23 = arith.constant 0 : index
    %26 = vector.load %arg10[%c0_22, %c0_23] : memref<32x128xf32, #tpu.memory_space<vmem>>, vector<32x128xf32>
    tpu.vector_store %arg10[%c0_22, %c0_23], %25 {strides = array<i32>} : memref<32x128xf32, #tpu.memory_space<vmem>>, vector<32x128xf32>,
    return
  }
  func.func @transform_0(%arg0: i32) -> (i32, i32) {
    %c0_i32 = arith.constant 0 : i32
    %c0_i32_0 = arith.constant 0 : i32
    return %arg0, %c0_i32 : i32, i32
  }
  func.func @transform_1(%arg0: i32) -> (i32, i32) {
    %c0_i32 = arith.constant 0 : i32
    %c0_i32_0 = arith.constant 0 : i32
    return %arg0, %c0_i32 : i32, i32
  }
  func.func @transform_2(%arg0: i32) -> (i32, i32) {
    %c0_i32 = arith.constant 0 : i32
    %c0_i32_0 = arith.constant 0 : i32
    %c0_i32_1 = arith.constant 0 : i32
    return %c0_i32, %c0_i32_0 : i32, i32
  }
  func.func @transform_3(%arg0: i32) -> (i32, i32) {
    %c0_i32 = arith.constant 0 : i32
    %c0_i32_0 = arith.constant 0 : i32
    %c0_i32_1 = arith.constant 0 : i32
    return %c0_i32, %c0_i32_0 : i32, i32
  }
  func.func @transform_4(%arg0: i32) -> (i32, i32) {
    %c0_i32 = arith.constant 0 : i32
    %c0_i32_0 = arith.constant 0 : i32
    %c0_i32_1 = arith.constant 0 : i32
    return %c0_i32, %c0_i32_0 : i32, i32
  }
  func.func @transform_5(%arg0: i32) -> (i32, i32) {
    %c0_i32 = arith.constant 0 : i32
    %c0_i32_0 = arith.constant 0 : i32
    %c0_i32_1 = arith.constant 0 : i32
    return %c0_i32, %c0_i32_0 : i32, i32
  }
  func.func @transform_6(%arg0: i32) -> (i32, i32) {
    %c0_i32 = arith.constant 0 : i32
    %c0_i32_0 = arith.constant 0 : i32
    %c0_i32_1 = arith.constant 0 : i32
    return %c0_i32, %c0_i32_0 : i32, i32
  }
  func.func @transform_7(%arg0: i32) -> (i32, i32) {
    %c0_i32 = arith.constant 0 : i32
    %c0_i32_0 = arith.constant 0 : i32
    %c0_i32_1 = arith.constant 0 : i32
    return %c0_i32, %c0_i32_0 : i32, i32
  }
  func.func @transform_8(%arg0: i32) -> (i32, i32) {
    %c0_i32 = arith.constant 0 : i32
    %c0_i32_0 = arith.constant 0 : i32
    %c0_i32_1 = arith.constant 0 : i32
    return %c0_i32, %c0_i32_0 : i32, i32
  }
  func.func @transform_9(%arg0: i32) -> (i32, i32) {
    %c0_i32 = arith.constant 0 : i32
    %c0_i32_0 = arith.constant 0 : i32
    return %arg0, %c0_i32 : i32, i32
  }
}

</mosaic_0001>

<llo_original>
// kernel: tpu_custom_call.1
$region0: #{tpu_custom_call.1}
  #allocation0 [shape = 'u32[]', space=smem, size = 0x4, offset = 0x4, fixed_abs, tag = 'smem constant byte address 0x4 - core index']
  #allocation1 [shape = 'u32[144,128]{1,0:T(1,128)}', space=vmem, size = 0x12000, scoped, tag = 'internal scratch']
  %s0 = inlined_call_operand.vmem [shape: bf16[64,16], index: 0, kind: input, shape index: {}]
  %s1 = inlined_call_operand.vmem [shape: bf16[64,16], index: 1, kind: input, shape index: {}]
  %s2 = inlined_call_operand.vmem [shape: bf16[16,128], index: 2, kind: input, shape index: {}]
  %s3 = inlined_call_operand.vmem [shape: bf16[16,128], index: 3, kind: input, shape index: {}]
  %s4 = inlined_call_operand.vmem [shape: f32[1,128], index: 4, kind: input, shape index: {}]
  %s5 = inlined_call_operand.vmem [shape: bf16[128,128], index: 5, kind: input, shape index: {}]
  %s6 = inlined_call_operand.vmem [shape: f32[1,128], index: 6, kind: input, shape index: {}]
  %s7 = inlined_call_operand.hbm [shape: bf16[128,128], index: 7, kind: input, shape index: {}]
  %s8 = inlined_call_operand.vmem [shape: f32[1,128], index: 8, kind: input, shape index: {}]
  %s9 = inlined_call_operand.hbm [shape: f32[64,128], index: 9, kind: output, shape index: {}]
  %s10 = sld [smem:[#allocation0]]
  $region73: #{tpu_custom_call.1} parent=0
    _
  %s12 = ssub.s32 1, %s10
  %s13 = scalar_select 0, %s12, %s10
  $region1: #{tpu_custom_call.1} parent=0
    #allocation2 [shape = 'u8[32768]{0}', space=vmem, size = 0x8000, scoped, tag = 'input window, operand 7, single buffered']
    #allocation3 [shape = 's32[2]{0}', space=sflag, size = 0x8, scoped, tag = 'scoped memory for tpu_custom_call.1']
    #allocation4 [shape = 's32[2]{0}', space=sflag, size = 0x8, scoped, tag = 'scoped memory for tpu_custom_call.1']
    #allocation5 [shape = 'u8[32768]{0}', space=vmem, size = 0x8000, scoped, tag = 'output window, operand 0']
    %14 = vsyncpa [#allocation3], 0
    %15 = vsyncpa [#allocation4], 0
    %s16 = scalar_lea.sflag [#allocation4], 1
    %17 = vsyncpa %s16, 0
    loop: start=0, step=1, limit=4
    $region2: #{tpu_custom_call.1} parent=1 // loop_pre_header
      _
    $region3: #{tpu_custom_call.1} parent=1 // loop_header
      %s19 = sphi 0, %s23
      %p20 = scmp.ge.s32.totalorder %s19, 4
      %s29 = sphi 0, %s31
      %s32 = sphi 0, %s29
      %s33 = sphi 0, %s32
      %s49 = sphi 0, %s33
      %s55 = sphi 0, %s57
      %s58 = sphi 0, %s55
      %s59 = sphi 0, %s58
      %s75 = sphi 0, %s59
      %s79 = sphi 0, %s79
      %s81 = sphi 0, %s79
      %s82 = sphi 0, %s81
      %s96 = sphi 0, %s82
      %s100 = sphi 0, %s100
      %s102 = sphi 0, %s100
      %s103 = sphi 0, %s102
      %s117 = sphi 0, %s103
      %s121 = sphi 0, %s121
      %s123 = sphi 0, %s121
      %s124 = sphi 0, %s123
      %s138 = sphi 0, %s124
      %s142 = sphi 0, %s142
      %s144 = sphi 0, %s142
      %s145 = sphi 0, %s144
      %s159 = sphi 0, %s145
      %s163 = sphi 0, %s163
      %s165 = sphi 0, %s163
      %s166 = sphi 0, %s165
      %s180 = sphi 0, %s166
      %s184 = sphi 0, %s184
      %s186 = sphi 0, %s184
      %s187 = sphi 0, %s186
      %s201 = sphi 0, %s187
      %s205 = sphi 0, %s205
      %s207 = sphi 0, %s205
      %s208 = sphi 0, %s207
      %s222 = sphi 0, %s208
      %s228 = sphi 0, %s230
      %s231 = sphi 0, %s228
      %s232 = sphi 0, %s231
      %s248 = sphi 0, %s232
    $region4: #{tpu_custom_call.1} parent=1 // loop_header_branch
      %22 = sbr.rel (%p20) target = $region8
    $region5: #{tpu_custom_call.1} parent=1 // loop_body
      %s24 = ssub.s32 %s19, 1
      %s25 = ssub.s32 %s19, 2
      %s26 = sadd.s32 %s19, 1
      %s27 = ssub.s32 %s19, %s26
      %p28 = scmp.eq.s32.totalorder %s27, 0
      %s30 = sadd.s32 %s29, 1
      %s31 = scalar_select %p28, %s29, %s30
      %p34 = pneg %p28
      %p35 = scmp.eq.s32.totalorder %s19, 1
      %p36 = por %p34, %p35
      %p37 = scmp.ne.s32.totalorder %s29, %s32
      %p38 = scmp.eq.s32.totalorder %s19, 0
      %p39 = por %p37, %p38
      %p40 = scmp.ne.s32.totalorder %s29, %s32
      %p41 = scmp.eq.s32.totalorder %s24, 1
      %p42 = por %p40, %p41
      %p43 = scmp.ne.s32.totalorder %s32, %s33
      %p44 = scmp.eq.s32.totalorder %s24, 0
      %p45 = por %p43, %p44
      %p46 = scmp.ne.s32.totalorder %s32, %s33
      %p47 = scmp.eq.s32.totalorder %s25, 1
      %p48 = por %p46, %p47
      %p50 = scmp.ne.s32.totalorder %s33, %s49
      %p51 = scmp.eq.s32.totalorder %s25, 0
      %p52 = por %p50, %p51
      %s53 = ssub.s32 %s19, %s26
      %p54 = scmp.eq.s32.totalorder %s53, 0
      %s56 = sadd.s32 %s55, 1
      %s57 = scalar_select %p54, %s55, %s56
      %p60 = pneg %p54
      %p61 = scmp.eq.s32.totalorder %s19, 1
      %p62 = por %p60, %p61
      %p63 = scmp.ne.s32.totalorder %s55, %s58
      %p64 = scmp.eq.s32.totalorder %s19, 0
      %p65 = por %p63, %p64
      %p66 = scmp.ne.s32.totalorder %s55, %s58
      %p67 = scmp.eq.s32.totalorder %s24, 1
      %p68 = por %p66, %p67
      %p69 = scmp.ne.s32.totalorder %s58, %s59
      %p70 = scmp.eq.s32.totalorder %s24, 0
      %p71 = por %p69, %p70
      %p72 = scmp.ne.s32.totalorder %s58, %s59
      %p73 = scmp.eq.s32.totalorder %s25, 1
      %p74 = por %p72, %p73
      %p76 = scmp.ne.s32.totalorder %s59, %s75
      %p77 = scmp.eq.s32.totalorder %s25, 0
      %p78 = por %p76, %p77
      %s80 = sadd.s32 %s79, 1
      %p83 = scmp.eq.s32.totalorder %s19, 1
      %p84 = scmp.ne.s32.totalorder %s79, %s81
      %p85 = scmp.eq.s32.totalorder %s19, 0
      %p86 = por %p84, %p85
      %p87 = scmp.ne.s32.totalorder %s79, %s81
      %p88 = scmp.eq.s32.totalorder %s24, 1
      %p89 = por %p87, %p88
      %p90 = scmp.ne.s32.totalorder %s81, %s82
      %p91 = scmp.eq.s32.totalorder %s24, 0
      %p92 = por %p90, %p91
      %p93 = scmp.ne.s32.totalorder %s81, %s82
      %p94 = scmp.eq.s32.totalorder %s25, 1
      %p95 = por %p93, %p94
      %p97 = scmp.ne.s32.totalorder %s82, %s96
      %p98 = scmp.eq.s32.totalorder %s25, 0
      %p99 = por %p97, %p98
      %s101 = sadd.s32 %s100, 1
      %p104 = scmp.eq.s32.totalorder %s19, 1
      %p105 = scmp.ne.s32.totalorder %s100, %s102
      %p106 = scmp.eq.s32.totalorder %s19, 0
      %p107 = por %p105, %p106
      %p108 = scmp.ne.s32.totalorder %s100, %s102
      %p109 = scmp.eq.s32.totalorder %s24, 1
      %p110 = por %p108, %p109
      %p111 = scmp.ne.s32.totalorder %s102, %s103
      %p112 = scmp.eq.s32.totalorder %s24, 0
      %p113 = por %p111, %p112
      %p114 = scmp.ne.s32.totalorder %s102, %s103
      %p115 = scmp.eq.s32.totalorder %s25, 1
      %p116 = por %p114, %p115
      %p118 = scmp.ne.s32.totalorder %s103, %s117
      %p119 = scmp.eq.s32.totalorder %s25, 0
      %p120 = por %p118, %p119
      %s122 = sadd.s32 %s121, 1
      %p125 = scmp.eq.s32.totalorder %s19, 1
      %p126 = scmp.ne.s32.totalorder %s121, %s123
      %p127 = scmp.eq.s32.totalorder %s19, 0
      %p128 = por %p126, %p127
      %p129 = scmp.ne.s32.totalorder %s121, %s123
      %p130 = scmp.eq.s32.totalorder %s24, 1
      %p131 = por %p129, %p130
      %p132 = scmp.ne.s32.totalorder %s123, %s124
      %p133 = scmp.eq.s32.totalorder %s24, 0
      %p134 = por %p132, %p133
      %p135 = scmp.ne.s32.totalorder %s123, %s124
      %p136 = scmp.eq.s32.totalorder %s25, 1
      %p137 = por %p135, %p136
      %p139 = scmp.ne.s32.totalorder %s124, %s138
      %p140 = scmp.eq.s32.totalorder %s25, 0
      %p141 = por %p139, %p140
      %s143 = sadd.s32 %s142, 1
      %p146 = scmp.eq.s32.totalorder %s19, 1
      %p147 = scmp.ne.s32.totalorder %s142, %s144
      %p148 = scmp.eq.s32.totalorder %s19, 0
      %p149 = por %p147, %p148
      %p150 = scmp.ne.s32.totalorder %s142, %s144
      %p151 = scmp.eq.s32.totalorder %s24, 1
      %p152 = por %p150, %p151
      %p153 = scmp.ne.s32.totalorder %s144, %s145
      %p154 = scmp.eq.s32.totalorder %s24, 0
      %p155 = por %p153, %p154
      %p156 = scmp.ne.s32.totalorder %s144, %s145
      %p157 = scmp.eq.s32.totalorder %s25, 1
      %p158 = por %p156, %p157
      %p160 = scmp.ne.s32.totalorder %s145, %s159
      %p161 = scmp.eq.s32.totalorder %s25, 0
      %p162 = por %p160, %p161
      %s164 = sadd.s32 %s163, 1
      %p167 = scmp.eq.s32.totalorder %s19, 1
      %p168 = scmp.ne.s32.totalorder %s163, %s165
      %p169 = scmp.eq.s32.totalorder %s19, 0
      %p170 = por %p168, %p169
      %p171 = scmp.ne.s32.totalorder %s163, %s165
      %p172 = scmp.eq.s32.totalorder %s24, 1
      %p173 = por %p171, %p172
      %p174 = scmp.ne.s32.totalorder %s165, %s166
      %p175 = scmp.eq.s32.totalorder %s24, 0
      %p176 = por %p174, %p175
      %p177 = scmp.ne.s32.totalorder %s165, %s166
      %p178 = scmp.eq.s32.totalorder %s25, 1
      %p179 = por %p177, %p178
      %p181 = scmp.ne.s32.totalorder %s166, %s180
      %p182 = scmp.eq.s32.totalorder %s25, 0
      %p183 = por %p181, %p182
      %s185 = sadd.s32 %s184, 1
      %p188 = scmp.eq.s32.totalorder %s19, 1
      %p189 = scmp.ne.s32.totalorder %s184, %s186
      %p190 = scmp.eq.s32.totalorder %s19, 0
      %p191 = por %p189, %p190
      %p192 = scmp.ne.s32.totalorder %s184, %s186
      %p193 = scmp.eq.s32.totalorder %s24, 1
      %p194 = por %p192, %p193
      %p195 = scmp.ne.s32.totalorder %s186, %s187
      %p196 = scmp.eq.s32.totalorder %s24, 0
      %p197 = por %p195, %p196
      %p198 = scmp.ne.s32.totalorder %s186, %s187
      %p199 = scmp.eq.s32.totalorder %s25, 1
      %p200 = por %p198, %p199
      %p202 = scmp.ne.s32.totalorder %s187, %s201
      %p203 = scmp.eq.s32.totalorder %s25, 0
      %p204 = por %p202, %p203
      %s206 = sadd.s32 %s205, 1
      %p209 = scmp.eq.s32.totalorder %s19, 1
      %p210 = scmp.ne.s32.totalorder %s205, %s207
      %p211 = scmp.eq.s32.totalorder %s19, 0
      %p212 = por %p210, %p211
      %p213 = scmp.ne.s32.totalorder %s205, %s207
      %p214 = scmp.eq.s32.totalorder %s24, 1
      %p215 = por %p213, %p214
      %p216 = scmp.ne.s32.totalorder %s207, %s208
      %p217 = scmp.eq.s32.totalorder %s24, 0
      %p218 = por %p216, %p217
      %p219 = scmp.ne.s32.totalorder %s207, %s208
      %p220 = scmp.eq.s32.totalorder %s25, 1
      %p221 = por %p219, %p220
      %p223 = scmp.ne.s32.totalorder %s208, %s222
      %p224 = scmp.eq.s32.totalorder %s25, 0
      %p225 = por %p223, %p224
      %s226 = ssub.s32 %s19, %s26
      %p227 = scmp.eq.s32.totalorder %s226, 0
      %s229 = sadd.s32 %s228, 1
      %s230 = scalar_select %p227, %s228, %s229
      %p233 = pneg %p227
      %p234 = scmp.eq.s32.totalorder %s19, 1
      %p235 = por %p233, %p234
      %p236 = scmp.ne.s32.totalorder %s228, %s231
      %p237 = scmp.eq.s32.totalorder %s19, 0
      %p238 = por %p236, %p237
      %p239 = scmp.ne.s32.totalorder %s228, %s231
      %p240 = scmp.eq.s32.totalorder %s24, 1
      %p241 = por %p239, %p240
      %p242 = scmp.ne.s32.totalorder %s231, %s232
      %p243 = scmp.eq.s32.totalorder %s24, 0
      %p244 = por %p242, %p243
      %p245 = scmp.ne.s32.totalorder %s231, %s232
      %p246 = scmp.eq.s32.totalorder %s25, 1
      %p247 = por %p245, %p246
      %p249 = scmp.ne.s32.totalorder %s232, %s248
      %p250 = scmp.eq.s32.totalorder %s25, 0
      %p251 = por %p249, %p250
      %p252 = scmp.le.s32.totalorder 1, %s19
      %p253 = scmp.lt.s32.totalorder %s19, 3
      %p254 = pnand %p252, %p253
      %p255 = pneg %p254
      // Predicated region
      $region9: #{tpu_custom_call.1} parent=5 // pred_check
        _
      $region10: #{tpu_custom_call.1} parent=5 // pred_check_branch
        %257 = sbr.rel (%p254) target = $region12
      $region11: #{tpu_custom_call.1} parent=5 // pred_region
        %s258 = ssub.s32 %s19, 1
        // Predicated region
        $region13: #{tpu_custom_call.1} parent=11 // pred_check
          %p259 = pneg %p92
        $region14: #{tpu_custom_call.1} parent=11 // pred_check_branch
          %261 = sbr.rel (%p259) target = $region16
        $region15: #{tpu_custom_call.1} parent=11 // pred_region
          _
        $region16: #{tpu_custom_call.1} parent=11 // pred_fallthru
          _
        // Predicated region
        $region17: #{tpu_custom_call.1} parent=11 // pred_check
          %p262 = pneg %p113
        $region18: #{tpu_custom_call.1} parent=11 // pred_check_branch
          %264 = sbr.rel (%p262) target = $region20
        $region19: #{tpu_custom_call.1} parent=11 // pred_region
          _
        $region20: #{tpu_custom_call.1} parent=11 // pred_fallthru
          _
        // Predicated region
        $region21: #{tpu_custom_call.1} parent=11 // pred_check
          %p265 = pneg %p134
        $region22: #{tpu_custom_call.1} parent=11 // pred_check_branch
          %267 = sbr.rel (%p265) target = $region24
        $region23: #{tpu_custom_call.1} parent=11 // pred_region
          _
        $region24: #{tpu_custom_call.1} parent=11 // pred_fallthru
          _
        // Predicated region
        $region25: #{tpu_custom_call.1} parent=11 // pred_check
          %p268 = pneg %p155
        $region26: #{tpu_custom_call.1} parent=11 // pred_check_branch
          %270 = sbr.rel (%p268) target = $region28
        $region27: #{tpu_custom_call.1} parent=11 // pred_region
          _
        $region28: #{tpu_custom_call.1} parent=11 // pred_fallthru
          _
        // Predicated region
        $region29: #{tpu_custom_call.1} parent=11 // pred_check
          %p271 = pneg %p176
        $region30: #{tpu_custom_call.1} parent=11 // pred_check_branch
          %273 = sbr.rel (%p271) target = $region32
        $region31: #{tpu_custom_call.1} parent=11 // pred_region
          _
        $region32: #{tpu_custom_call.1} parent=11 // pred_fallthru
          _
        // Predicated region
        $region33: #{tpu_custom_call.1} parent=11 // pred_check
          %p274 = pneg %p197
        $region34: #{tpu_custom_call.1} parent=11 // pred_check_branch
          %276 = sbr.rel (%p274) target = $region36
        $region35: #{tpu_custom_call.1} parent=11 // pred_region
          %s278 = ssub.s32 1024, 1024
          %279 = vsyncadd [#allocation3], %s278
          %s280 = sshll.u32 [#allocation2], 4
          %s281 = int_to_ptr.vmem [resolvable:$true] %s280
          %286 = dma.hbm_to_vmem [thread:$0]  %s7, 1024, %s281, [#allocation3], 64, 64, 4
        $region36: #{tpu_custom_call.1} parent=11 // pred_fallthru
          _
        // Predicated region
        $region37: #{tpu_custom_call.1} parent=11 // pred_check
          %p287 = pneg %p218
        $region38: #{tpu_custom_call.1} parent=11 // pred_check_branch
          %289 = sbr.rel (%p287) target = $region40
        $region39: #{tpu_custom_call.1} parent=11 // pred_region
          _
        $region40: #{tpu_custom_call.1} parent=11 // pred_fallthru
          _
      $region12: #{tpu_custom_call.1} parent=5 // pred_fallthru
        _
      %p290 = scmp.lt.s32.totalorder %s19, 2
      // Predicated region
      $region41: #{tpu_custom_call.1} parent=5 // pred_check
        %p291 = pneg %p290
      $region42: #{tpu_custom_call.1} parent=5 // pred_check_branch
        %293 = sbr.rel (%p291) target = $region44
      $region43: #{tpu_custom_call.1} parent=5 // pred_region
        // Predicated region
        $region45: #{tpu_custom_call.1} parent=43 // pred_check
          %p294 = pneg %p39
        $region46: #{tpu_custom_call.1} parent=43 // pred_check_branch
          %296 = sbr.rel (%p294) target = $region48
        $region47: #{tpu_custom_call.1} parent=43 // pred_region
          %s297 = smul.u32 4, %s19
          %p298 = scmp.lt.s32.totalorder %s297, 7
          %s299 = scalar_select %p298, %s297, 7
          %s300 = smul.addr %s299, 4
          %s301 = scalar_lea.vmem %s0, %s300
          %s302 = smul.u32 4, %s19
        $region48: #{tpu_custom_call.1} parent=43 // pred_fallthru
          _
        // Predicated region
        $region49: #{tpu_custom_call.1} parent=43 // pred_check
          %p303 = pneg %p65
        $region50: #{tpu_custom_call.1} parent=43 // pred_check_branch
          %305 = sbr.rel (%p303) target = $region52
        $region51: #{tpu_custom_call.1} parent=43 // pred_region
          %s306 = smul.u32 4, %s19
          %p307 = scmp.lt.s32.totalorder %s306, 7
          %s308 = scalar_select %p307, %s306, 7
          %s309 = smul.addr %s308, 4
          %s310 = scalar_lea.vmem %s1, %s309
          %s311 = smul.u32 4, %s19
        $region52: #{tpu_custom_call.1} parent=43 // pred_fallthru
          _
      $region44: #{tpu_custom_call.1} parent=5 // pred_fallthru
        _
      %p312 = scmp.le.s32.totalorder 1, %s19
      %p313 = scmp.lt.s32.totalorder %s19, 3
      %p314 = pnand %p312, %p313
      %p315 = pneg %p314
      // Predicated region
      $region53: #{tpu_custom_call.1} parent=5 // pred_check
        _
      $region54: #{tpu_custom_call.1} parent=5 // pred_check_branch
        %317 = sbr.rel (%p314) target = $region56
      $region55: #{tpu_custom_call.1} parent=5 // pred_region
        %s318 = ssub.s32 %s19, 1
        // Predicated region
        $region57: #{tpu_custom_call.1} parent=55 // pred_check
          %p319 = pneg %p197
        $region58: #{tpu_custom_call.1} parent=55 // pred_check_branch
          %321 = sbr.rel (%p319) target = $region60
        $region59: #{tpu_custom_call.1} parent=55 // pred_region
          %322 = dma.done [#allocation3], 1024
        $region60: #{tpu_custom_call.1} parent=55 // pred_fallthru
          _
        %s323 = smul.u32 4, %s24
        %p324 = scmp.lt.s32.totalorder %s323, 7
        %s325 = scalar_select %p324, %s323, 7
        %s326 = smul.addr %s325, 4
        %s327 = scalar_lea.vmem %s0, %s326
        %p328 = pneg %p45
        %p329 = pneg %p42
        %s330 = smul.u32 4, %s24
        %p331 = scmp.lt.s32.totalorder %s330, 7
        %s332 = scalar_select %p331, %s330, 7
        %s333 = smul.addr %s332, 4
        %s334 = scalar_lea.vmem %s1, %s333
        %p335 = pneg %p71
        %p336 = pneg %p68
        %p337 = pneg %p92
        %p338 = pneg %p89
        %p339 = pneg %p113
        %p340 = pneg %p110
        %p341 = pneg %p134
        %p342 = pneg %p131
        %p343 = pneg %p155
        %p344 = pneg %p152
        %p345 = pneg %p176
        %p346 = pneg %p173
        %p347 = pneg %p197
        %p348 = pneg %p194
        %p349 = pneg %p218
        %p350 = pneg %p215
        %p351 = pneg %p244
        %p352 = pneg %p241
        %s353 = sand.u32 %s231, 1
        %s354 = scalar_lea.sflag [#allocation4], %s353
        %s355 = sand.u32 %s231, 1
        %s356 = smul.addr %s355, 32
        %s357 = scalar_lea.vmem [#allocation5], %s356
        %s358 = smul.u32 4, %s24
        %p359 = scmp.lt.s32.totalorder %s358, 7
        %s360 = scalar_select %p359, %s358, 7
        %s361 = smul.addr %s360, 4
        %s362 = scalar_lea.vmem %s0, %s361
        %s363 = smul.u32 4, %s24
        %s364 = smul.u32 4, %s24
        %p365 = scmp.lt.s32.totalorder %s364, 7
        %s366 = scalar_select %p365, %s364, 7
        %s367 = smul.addr %s366, 4
        %s368 = scalar_lea.vmem %s1, %s367
        %s369 = smul.u32 4, %s24
        %s370 = smul.u32 4, %s24
        %v372 = vld [vmem:[%s362] sm:$0xf]
        %v373 = vld [vmem:[%s362 + $0x4] sm:$0xf]
        %v374 = vld [vmem:[%s362 + $0x8] sm:$0xf]
        %v375 = vld [vmem:[%s362 + $0xc] sm:$0xf]
        %v376 = vld [vmem:[%s2] sm:$0xf]
        %v377 = vld [vmem:[%s2 + $0x4] sm:$0xf]
        %v378 = vld [vmem:[%s368] sm:$0xf]
        %v379 = vld [vmem:[%s368 + $0x4] sm:$0xf]
        %v380 = vld [vmem:[%s368 + $0x8] sm:$0xf]
        %v381 = vld [vmem:[%s368 + $0xc] sm:$0xf]
        %v382 = vld [vmem:[%s3] sm:$0xf]
        %v383 = vld [vmem:[%s3 + $0x4] sm:$0xf]
        %v388 = vunpack.c.l.b16 %v378
        %v389 = vunpack.c.l.b16 %v379
        %v390 = vunpack.c.l.b16 %v380
        %v391 = vunpack.c.l.b16 %v381
        %v392 = vpack.c.b16 %v389, %v388
        %v393 = vpack.c.b16 %v391, %v390
        %v396 = vunpack.c.l.b16 %v382
        %v397 = vunpack.c.l.b16 %v383
        %v398 = vpack.c.b16 %v397, %v396
        %vm400 = vcmask 130048
        %v402 = vsel %vm400, %v392, 0
        %v405 = vsel %vm400, %v393, 0
        %407 = vmatprep.subr.bf16.mxu0 0
        %408 = vmatpush1.bf16.msra.mxu0 %v398
        %409 = vmatprep.subr.bf16.mxu0 0
        %410 = vmatpush1.bf16.msra.mxu0 0
        %411 = vmatprep.subr.bf16.mxu0 0
        %412 = vmatpush1.bf16.msra.mxu0 0
        %413 = vmatprep.subr.bf16.mxu0 0
        %414 = vmatpush1.bf16.msra.mxu0 0
        %415 = vmatprep.subr.bf16.mxu0 0
        %416 = vmatpush1.bf16.msra.mxu0 0
        %417 = vmatprep.subr.bf16.mxu0 0
        %418 = vmatpush1.bf16.msra.mxu0 0
        %419 = vmatprep.subr.bf16.mxu0 0
        %420 = vmatpush1.bf16.msra.mxu0 0
        %421 = vmatprep.subr.bf16.mxu0 0
        %422 = vmatpush1.bf16.msra.mxu0 0
        %423 = vmatprep.subr.bf16.mxu0 0
        %424 = vmatpush1.bf16.msra.mxu0 0
        %425 = vmatprep.subr.bf16.mxu0 0
        %426 = vmatpush1.bf16.msra.mxu0 0
        %427 = vmatprep.subr.bf16.mxu0 0
        %428 = vmatpush1.bf16.msra.mxu0 0
        %429 = vmatprep.subr.bf16.mxu0 0
        %430 = vmatpush1.bf16.msra.mxu0 0
        %431 = vmatprep.subr.bf16.mxu0 0
        %432 = vmatpush1.bf16.msra.mxu0 0
        %433 = vmatprep.subr.bf16.mxu0 0
        %434 = vmatpush1.bf16.msra.mxu0 0
        %435 = vmatprep.subr.bf16.mxu0 0
        %436 = vmatpush1.bf16.msra.mxu0 0
        %437 = vmatprep.subr.bf16.mxu0 0
        %438 = vmatpush1.bf16.msra.mxu0 0
        %439 = vmatprep.mubr.bf16.mxu0 0
        %440 = vmatmul.mubr.bf16.gmra.mrb[0].mxu0 %v402
        %v441 = vpop.f32.mrb[0].mxu0
        %v442 = vadd.f32 0.0, %v441
        %v443 = vpop.f32.mrb[0].mxu0
        %v444 = vpop.f32.mrb[0].mxu0
        %v445 = vadd.f32 0.0, %v444
        %v446 = vpop.f32.mrb[0].mxu0
        %447 = vmatprep.mubr.bf16.mxu0 0
        %448 = vmatmul.mubr.bf16.gmra.mrb[0].mxu0 %v405
        %v449 = vpop.f32.mrb[0].mxu0
        %v450 = vadd.f32 0.0, %v449
        %v451 = vpop.f32.mrb[0].mxu0
        %v452 = vpop.f32.mrb[0].mxu0
        %v453 = vadd.f32 0.0, %v452
        %v454 = vpop.f32.mrb[0].mxu0
        %455 = vdwg.mxu0
        %v460 = vunpack.c.l.b16 %v372
        %v461 = vunpack.c.l.b16 %v373
        %v462 = vunpack.c.l.b16 %v374
        %v463 = vunpack.c.l.b16 %v375
        %v464 = vpack.c.b16 %v461, %v460
        %v465 = vpack.c.b16 %v463, %v462
        %v468 = vunpack.c.l.b16 %v376
        %v469 = vunpack.c.l.b16 %v377
        %v470 = vpack.c.b16 %v469, %v468
        %v473 = vsel %vm400, %v464, 0
        %v476 = vsel %vm400, %v465, 0
        %478 = vmatprep.subr.bf16.mxu0 0
        %479 = vmatpush1.bf16.msra.mxu0 %v470
        %480 = vmatprep.subr.bf16.mxu0 0
        %481 = vmatpush1.bf16.msra.mxu0 0
        %482 = vmatprep.subr.bf16.mxu0 0
        %483 = vmatpush1.bf16.msra.mxu0 0
        %484 = vmatprep.subr.bf16.mxu0 0
        %485 = vmatpush1.bf16.msra.mxu0 0
        %486 = vmatprep.subr.bf16.mxu0 0
        %487 = vmatpush1.bf16.msra.mxu0 0
        %488 = vmatprep.subr.bf16.mxu0 0
        %489 = vmatpush1.bf16.msra.mxu0 0
        %490 = vmatprep.subr.bf16.mxu0 0
        %491 = vmatpush1.bf16.msra.mxu0 0
        %492 = vmatprep.subr.bf16.mxu0 0
        %493 = vmatpush1.bf16.msra.mxu0 0
        %494 = vmatprep.subr.bf16.mxu0 0
        %495 = vmatpush1.bf16.msra.mxu0 0
        %496 = vmatprep.subr.bf16.mxu0 0
        %497 = vmatpush1.bf16.msra.mxu0 0
        %498 = vmatprep.subr.bf16.mxu0 0
        %499 = vmatpush1.bf16.msra.mxu0 0
        %500 = vmatprep.subr.bf16.mxu0 0
        %501 = vmatpush1.bf16.msra.mxu0 0
        %502 = vmatprep.subr.bf16.mxu0 0
        %503 = vmatpush1.bf16.msra.mxu0 0
        %504 = vmatprep.subr.bf16.mxu0 0
        %505 = vmatpush1.bf16.msra.mxu0 0
        %506 = vmatprep.subr.bf16.mxu0 0
        %507 = vmatpush1.bf16.msra.mxu0 0
        %508 = vmatprep.subr.bf16.mxu0 0
        %509 = vmatpush1.bf16.msra.mxu0 0
        %510 = vmatprep.mubr.bf16.mxu0 0
        %511 = vmatmul.mubr.bf16.gmra.mrb[0].mxu0 %v473
        %v512 = vpop.f32.mrb[0].mxu0
        %v513 = vadd.f32 %v442, %v512
        %v514 = vpop.f32.mrb[0].mxu0
        %v515 = vpop.f32.mrb[0].mxu0
        %v516 = vadd.f32 %v445, %v515
        %v517 = vpop.f32.mrb[0].mxu0
        %518 = vmatprep.mubr.bf16.mxu0 0
        %519 = vmatmul.mubr.bf16.gmra.mrb[0].mxu0 %v476
        %v520 = vpop.f32.mrb[0].mxu0
        %v521 = vadd.f32 %v450, %v520
        %v522 = vpop.f32.mrb[0].mxu0
        %v523 = vpop.f32.mrb[0].mxu0
        %v524 = vadd.f32 %v453, %v523
        %v525 = vpop.f32.mrb[0].mxu0
        %526 = vdwg.mxu0
        %v527 = vld [vmem:[%s4] sm:$0x1]
        %v529 = vlaneseq
        %v530 = vshrl.u32 %v529, 7
        %v531 = vsub.s32 0, %v530
        %v532 = vrot.slane %v527, %v531
        %v534 = vadd.f32 %v513, %v532
        %v535 = vadd.f32 %v516, %v532
        %v536 = vadd.f32 %v521, %v532
        %v537 = vadd.f32 %v524, %v532
        %v538 = vmax.f32 %v534, 0.0
        %v539 = vmax.f32 %v535, 0.0
        %v540 = vmax.f32 %v536, 0.0
        %v541 = vmax.f32 %v537, 0.0
        %v542 = vpack.c.bf16 %v539, %v538
        %v543 = vpack.c.bf16 %v541, %v540
        %v544 = vld [vmem:[%s5] sm:$0xf]
        %v545 = vld [vmem:[%s5 + $0x4] sm:$0xf]
        %v546 = vld [vmem:[%s5 + $0x8] sm:$0xf]
        %v547 = vld [vmem:[%s5 + $0xc] sm:$0xf]
        %v548 = vld [vmem:[%s5 + $0x10] sm:$0xf]
        %v549 = vld [vmem:[%s5 + $0x14] sm:$0xf]
        %v550 = vld [vmem:[%s5 + $0x18] sm:$0xf]
        %v551 = vld [vmem:[%s5 + $0x1c] sm:$0xf]
        %v552 = vld [vmem:[%s5 + $0x20] sm:$0xf]
        %v553 = vld [vmem:[%s5 + $0x24] sm:$0xf]
        %v554 = vld [vmem:[%s5 + $0x28] sm:$0xf]
        %v555 = vld [vmem:[%s5 + $0x2c] sm:$0xf]
        %v556 = vld [vmem:[%s5 + $0x30] sm:$0xf]
        %v557 = vld [vmem:[%s5 + $0x34] sm:$0xf]
        %v558 = vld [vmem:[%s5 + $0x38] sm:$0xf]
        %v559 = vld [vmem:[%s5 + $0x3c] sm:$0xf]
        %v560 = vld [vmem:[%s6] sm:$0x1]
        %v562 = vlaneseq
        %v563 = vshrl.u32 %v562, 7
        %v564 = vsub.s32 0, %v563
        %v565 = vrot.slane %v560, %v564
        %v583 = vunpack.c.l.b16 %v544
        %v584 = vunpack.c.l.b16 %v545
        %v585 = vunpack.c.l.b16 %v546
        %v586 = vunpack.c.l.b16 %v547
        %v587 = vunpack.c.l.b16 %v548
        %v588 = vunpack.c.l.b16 %v549
        %v589 = vunpack.c.l.b16 %v550
        %v590 = vunpack.c.l.b16 %v551
        %v591 = vunpack.c.l.b16 %v552
        %v592 = vunpack.c.l.b16 %v553
        %v593 = vunpack.c.l.b16 %v554
        %v594 = vunpack.c.l.b16 %v555
        %v595 = vunpack.c.l.b16 %v556
        %v596 = vunpack.c.l.b16 %v557
        %v597 = vunpack.c.l.b16 %v558
        %v598 = vunpack.c.l.b16 %v559
        %v599 = vpack.c.b16 %v584, %v583
        %v600 = vpack.c.b16 %v586, %v585
        %v601 = vpack.c.b16 %v588, %v587
        %v602 = vpack.c.b16 %v590, %v589
        %v603 = vpack.c.b16 %v592, %v591
        %v604 = vpack.c.b16 %v594, %v593
        %v605 = vpack.c.b16 %v596, %v595
        %v606 = vpack.c.b16 %v598, %v597
        %615 = vmatprep.subr.bf16.mxu0 0
        %616 = vmatpush1.bf16.msra.mxu0 %v599
        %617 = vmatprep.subr.bf16.mxu0 0
        %618 = vmatpush1.bf16.msra.mxu0 %v600
        %619 = vmatprep.subr.bf16.mxu0 0
        %620 = vmatpush1.bf16.msra.mxu0 %v601
        %621 = vmatprep.subr.bf16.mxu0 0
        %622 = vmatpush1.bf16.msra.mxu0 %v602
        %623 = vmatprep.subr.bf16.mxu0 0
        %624 = vmatpush1.bf16.msra.mxu0 %v603
        %625 = vmatprep.subr.bf16.mxu0 0
        %626 = vmatpush1.bf16.msra.mxu0 %v604
        %627 = vmatprep.subr.bf16.mxu0 0
        %628 = vmatpush1.bf16.msra.mxu0 %v605
        %629 = vmatprep.subr.bf16.mxu0 0
        %630 = vmatpush1.bf16.msra.mxu0 %v606
        %631 = vmatprep.subr.bf16.mxu0 0
        %632 = vmatpush1.bf16.msra.mxu0 0
        %633 = vmatprep.subr.bf16.mxu0 0
        %634 = vmatpush1.bf16.msra.mxu0 0
        %635 = vmatprep.subr.bf16.mxu0 0
        %636 = vmatpush1.bf16.msra.mxu0 0
        %637 = vmatprep.subr.bf16.mxu0 0
        %638 = vmatpush1.bf16.msra.mxu0 0
        %639 = vmatprep.subr.bf16.mxu0 0
        %640 = vmatpush1.bf16.msra.mxu0 0
        %641 = vmatprep.subr.bf16.mxu0 0
        %642 = vmatpush1.bf16.msra.mxu0 0
        %643 = vmatprep.subr.bf16.mxu0 0
        %644 = vmatpush1.bf16.msra.mxu0 0
        %645 = vmatprep.subr.bf16.mxu0 0
        %646 = vmatpush1.bf16.msra.mxu0 0
        %647 = vmatprep.mubr.bf16.mxu0 0
        %648 = vmatmul.mubr.bf16.gmra.mrb[0].mxu0 %v542
        %v649 = vpop.f32.mrb[0].mxu0
        %v650 = vadd.f32 %v565, %v649
        %v651 = vpop.f32.mrb[0].mxu0
        %v652 = vpop.f32.mrb[0].mxu0
        %v653 = vadd.f32 %v565, %v652
        %v654 = vpop.f32.mrb[0].mxu0
        %655 = vmatprep.mubr.bf16.mxu0 0
        %656 = vmatmul.mubr.bf16.gmra.mrb[0].mxu0 %v543
        %v657 = vpop.f32.mrb[0].mxu0
        %v658 = vadd.f32 %v565, %v657
        %v659 = vpop.f32.mrb[0].mxu0
        %v660 = vpop.f32.mrb[0].mxu0
        %v661 = vadd.f32 %v565, %v660
        %v662 = vpop.f32.mrb[0].mxu0
        %663 = vdwg.mxu0
        %v664 = vmax.f32 %v650, 0.0
        %v665 = vmax.f32 %v653, 0.0
        %v666 = vmax.f32 %v658, 0.0
        %v667 = vmax.f32 %v661, 0.0
        %v668 = vpack.c.bf16 %v665, %v664
        %v669 = vpack.c.bf16 %v667, %v666
        %v670 = vld [vmem:[#allocation2] sm:$0xf]
        %v671 = vld [vmem:[#allocation2 + $0x4] sm:$0xf]
        %v672 = vld [vmem:[#allocation2 + $0x8] sm:$0xf]
        %v673 = vld [vmem:[#allocation2 + $0xc] sm:$0xf]
        %v674 = vld [vmem:[#allocation2 + $0x10] sm:$0xf]
        %v675 = vld [vmem:[#allocation2 + $0x14] sm:$0xf]
        %v676 = vld [vmem:[#allocation2 + $0x18] sm:$0xf]
        %v677 = vld [vmem:[#allocation2 + $0x1c] sm:$0xf]
        %v678 = vld [vmem:[#allocation2 + $0x20] sm:$0xf]
        %v679 = vld [vmem:[#allocation2 + $0x24] sm:$0xf]
        %v680 = vld [vmem:[#allocation2 + $0x28] sm:$0xf]
        %v681 = vld [vmem:[#allocation2 + $0x2c] sm:$0xf]
        %v682 = vld [vmem:[#allocation2 + $0x30] sm:$0xf]
        %v683 = vld [vmem:[#allocation2 + $0x34] sm:$0xf]
        %v684 = vld [vmem:[#allocation2 + $0x38] sm:$0xf]
        %v685 = vld [vmem:[#allocation2 + $0x3c] sm:$0xf]
        %v686 = vld [vmem:[%s8] sm:$0x1]
        %v688 = vlaneseq
        %v689 = vshrl.u32 %v688, 7
        %v690 = vsub.s32 0, %v689
        %v691 = vrot.slane %v686, %v690
        %v709 = vunpack.c.l.b16 %v670
        %v710 = vunpack.c.l.b16 %v671
        %v711 = vunpack.c.l.b16 %v672
        %v712 = vunpack.c.l.b16 %v673
        %v713 = vunpack.c.l.b16 %v674
        %v714 = vunpack.c.l.b16 %v675
        %v715 = vunpack.c.l.b16 %v676
        %v716 = vunpack.c.l.b16 %v677
        %v717 = vunpack.c.l.b16 %v678
        %v718 = vunpack.c.l.b16 %v679
        %v719 = vunpack.c.l.b16 %v680
        %v720 = vunpack.c.l.b16 %v681
        %v721 = vunpack.c.l.b16 %v682
        %v722 = vunpack.c.l.b16 %v683
        %v723 = vunpack.c.l.b16 %v684
        %v724 = vunpack.c.l.b16 %v685
        %v725 = vpack.c.b16 %v710, %v709
        %v726 = vpack.c.b16 %v712, %v711
        %v727 = vpack.c.b16 %v714, %v713
        %v728 = vpack.c.b16 %v716, %v715
        %v729 = vpack.c.b16 %v718, %v717
        %v730 = vpack.c.b16 %v720, %v719
        %v731 = vpack.c.b16 %v722, %v721
        %v732 = vpack.c.b16 %v724, %v723
        %741 = vmatprep.subr.bf16.mxu0 0
        %742 = vmatpush1.bf16.msra.mxu0 %v725
        %743 = vmatprep.subr.bf16.mxu0 0
        %744 = vmatpush1.bf16.msra.mxu0 %v726
        %745 = vmatprep.subr.bf16.mxu0 0
        %746 = vmatpush1.bf16.msra.mxu0 %v727
        %747 = vmatprep.subr.bf16.mxu0 0
        %748 = vmatpush1.bf16.msra.mxu0 %v728
        %749 = vmatprep.subr.bf16.mxu0 0
        %750 = vmatpush1.bf16.msra.mxu0 %v729
        %751 = vmatprep.subr.bf16.mxu0 0
        %752 = vmatpush1.bf16.msra.mxu0 %v730
        %753 = vmatprep.subr.bf16.mxu0 0
        %754 = vmatpush1.bf16.msra.mxu0 %v731
        %755 = vmatprep.subr.bf16.mxu0 0
        %756 = vmatpush1.bf16.msra.mxu0 %v732
        %757 = vmatprep.subr.bf16.mxu0 0
        %758 = vmatpush1.bf16.msra.mxu0 0
        %759 = vmatprep.subr.bf16.mxu0 0
        %760 = vmatpush1.bf16.msra.mxu0 0
        %761 = vmatprep.subr.bf16.mxu0 0
        %762 = vmatpush1.bf16.msra.mxu0 0
        %763 = vmatprep.subr.bf16.mxu0 0
        %764 = vmatpush1.bf16.msra.mxu0 0
        %765 = vmatprep.subr.bf16.mxu0 0
        %766 = vmatpush1.bf16.msra.mxu0 0
        %767 = vmatprep.subr.bf16.mxu0 0
        %768 = vmatpush1.bf16.msra.mxu0 0
        %769 = vmatprep.subr.bf16.mxu0 0
        %770 = vmatpush1.bf16.msra.mxu0 0
        %771 = vmatprep.subr.bf16.mxu0 0
        %772 = vmatpush1.bf16.msra.mxu0 0
        %773 = vmatprep.mubr.bf16.mxu0 0
        %774 = vmatmul.mubr.bf16.gmra.mrb[0].mxu0 %v668
        %v775 = vpop.f32.mrb[0].mxu0
        %v776 = vadd.f32 %v691, %v775
        %v777 = vpop.f32.mrb[0].mxu0
        %v778 = vpop.f32.mrb[0].mxu0
        %v779 = vadd.f32 %v691, %v778
        %v780 = vpop.f32.mrb[0].mxu0
        %781 = vmatprep.mubr.bf16.mxu0 0
        %782 = vmatmul.mubr.bf16.gmra.mrb[0].mxu0 %v669
        %v783 = vpop.f32.mrb[0].mxu0
        %v784 = vadd.f32 %v691, %v783
        %v785 = vpop.f32.mrb[0].mxu0
        %v786 = vpop.f32.mrb[0].mxu0
        %v787 = vadd.f32 %v691, %v786
        %v788 = vpop.f32.mrb[0].mxu0
        %789 = vdwg.mxu0
        %790 = vst [vmem:[%s357] sm:$0xff] %v776
        %791 = vst [vmem:[%s357 + $0x8] sm:$0xff] %v779
        %792 = vst [vmem:[%s357 + $0x10] sm:$0xff] %v784
        %793 = vst [vmem:[%s357 + $0x18] sm:$0xff] %v787
        %s794 = sand.u32 %s231, 1
        %s795 = scalar_lea.sflag [#allocation4], %s794
        %s796 = sand.u32 %s231, 1
        %s797 = smul.addr %s796, 32
        %s798 = scalar_lea.vmem [#allocation5], %s797
        // Predicated region
        $region61: #{tpu_custom_call.1} parent=55 // pred_check
          %p799 = pneg %p241
        $region62: #{tpu_custom_call.1} parent=55 // pred_check_branch
          %801 = sbr.rel (%p799) target = $region64
        $region63: #{tpu_custom_call.1} parent=55 // pred_region
          %s802 = smul.u32 4, %s24
          %s804 = ssub.s32 512, 512
          %805 = vsyncadd %s795, %s804
          %s806 = smul.addr %s802, 128
          %s807 = scalar_lea.hbm %s9, %s806
          %s808 = sshll.u32 %s798, 4
          %s809 = int_to_ptr.vmem [resolvable:$true] %s808
          %814 = dma.vmem_to_hbm [thread:$0]  %s809, 512, %s807, %s795, 128, 128, 8
        $region64: #{tpu_custom_call.1} parent=55 // pred_fallthru
          _
      $region56: #{tpu_custom_call.1} parent=5 // pred_fallthru
        _
      %p815 = scmp.le.s32.totalorder 2, %s19
      // Predicated region
      $region65: #{tpu_custom_call.1} parent=5 // pred_check
        %p816 = pneg %p815
      $region66: #{tpu_custom_call.1} parent=5 // pred_check_branch
        %818 = sbr.rel (%p816) target = $region68
      $region67: #{tpu_custom_call.1} parent=5 // pred_region
        %s819 = ssub.s32 %s19, 2
        // Predicated region
        $region69: #{tpu_custom_call.1} parent=67 // pred_check
          %p820 = pneg %p247
        $region70: #{tpu_custom_call.1} parent=67 // pred_check_branch
          %822 = sbr.rel (%p820) target = $region72
        $region71: #{tpu_custom_call.1} parent=67 // pred_region
          %s823 = sand.u32 %s232, 1
          %s824 = scalar_lea.sflag [#allocation4], %s823
          %s825 = sand.u32 %s232, 1
          %s826 = smul.addr %s825, 32
          %s827 = scalar_lea.vmem [#allocation5], %s826
          %828 = dma.done %s824, 512
        $region72: #{tpu_custom_call.1} parent=67 // pred_fallthru
          _
      $region68: #{tpu_custom_call.1} parent=5 // pred_fallthru
        _
    $region6: #{tpu_custom_call.1} parent=1 // loop_footer
      %s23 = sadd.s32 1, %s19
    $region7: #{tpu_custom_call.1} parent=1 // loop_footer_branch
      %18 = sbr.rel target = $region3
    $region8: #{tpu_custom_call.1} parent=1 // loop_exit
      _
    %829 = vsyncpa [#allocation3], 1
    %s830 = scalar_lea.sflag [#allocation3], 1
    %831 = vsyncpa %s830, 1
    %832 = vsyncpa [#allocation4], 1
    %s833 = scalar_lea.sflag [#allocation4], 1
    %834 = vsyncpa %s833, 1

</llo_original>
